<compile_context>
chip_gen: v7x
topology: tpu7x:2x2x1
jax: 0.10.0
libtpu: 0.0.40
codegen_flags: <defaults>
</compile_context>

<pallas_src>
import jax
import jax.numpy as jnp
from jax.experimental import pallas as pl
from jax.experimental.pallas import tpu as pltpu

BN_EPS = 0.001


def feature_mixing_kernel(x_ref, scale_ref, shift_ref,
                          w1_ref, b1_ref, w2_ref, b2_ref, out_ref):
    # x_ref block: (TM, S) rows of the flattened (B*T, S) activation.
    x = x_ref[...]                                          # (TM, S) f32

    # Folded BatchNorm (eval): single fused multiply-add.
    xn = x * scale_ref[...] + shift_ref[...]                # (TM, S)

    # Linear 1 (n_series -> ff_dim) + ReLU     [MXU, M=TM, K=S, N=FF]
    h = jnp.dot(xn, w1_ref[...], preferred_element_type=jnp.float32)
    h = jnp.maximum(h + b1_ref[...], 0.0)                   # (TM, FF)

    # Linear 2 (ff_dim -> n_series)            [MXU, M=TM, K=FF, N=S]
    y = jnp.dot(h, w2_ref[...], preferred_element_type=jnp.float32)

    # Bias + residual (residual uses the PRE-norm input, as in the module).
    out_ref[...] = (y + b2_ref[...] + x).astype(out_ref.dtype)


def _choose_tb(B, T, target_rows):
    """Pick batch-block TB: TB | B, (TB*T) legal for the (8, lane) sublane rule,
    ~target_rows rows per step, and >=2 grid steps when B >= 2 (v7x megacore)."""
    def ok(tb):
        return B % tb == 0 and ((tb * T) % 8 == 0 or tb == B)

    candidates = [tb for tb in range(1, B + 1) if ok(tb)]
    if not candidates:
        return B                        # full-array block is always legal
    within = [tb for tb in candidates if tb * T <= target_rows]
    tb = max(within) if within else min(candidates)
    if B // tb < 2:                     # keep both v7x TensorCores busy
        smaller = [c for c in candidates if c < tb and B // c >= 2]
        if smaller:
            tb = max(smaller)
    return tb


def feature_mixing(x, bn_mean, bn_var, bn_gamma, bn_beta, w1, b1, w2, b2,
                   *, target_rows=1024):
    """x: (B, T, S) float32. w1: (S, FF) = W1^T, w2: (FF, S) = W2^T.
    Returns (B, T, S)."""
    B, T, S = x.shape
    FF = w1.shape[1]

    # ---- Fold BatchNorm (eval) into one affine, computed once on host/XLA ----
    scale1d = bn_gamma * jax.lax.rsqrt(bn_var + BN_EPS)      # (T*S,)
    shift1d = bn_beta - bn_mean * scale1d                    # (T*S,)
    scale2d = scale1d.reshape(T, S)
    shift2d = shift1d.reshape(T, S)

    # ---- Batch fusion: flatten to (B*T, S) and tile TM = TB*T rows per step ----
    tb = _choose_tb(B, T, target_rows)
    tm = tb * T
    grid = (B // tb,)

    x2d = x.reshape(B * T, S)                 # free reshape (contiguous)
    scale_t = jnp.tile(scale2d, (tb, 1))      # (TM, S): same block every step
    shift_t = jnp.tile(shift2d, (tb, 1))      # (TM, S)
    b1_2d = b1.reshape(1, FF)
    b2_2d = b2.reshape(1, S)

    # NOTE (8,128) rule: block last dim = S equals the full array's last dim, and
    # the second-to-last dim TM is a multiple of 8 (or the full extent) by
    # construction in _choose_tb — do not tile S without padding to 128.
    const2d = lambda shape: pl.BlockSpec(shape, lambda i: (0, 0))

    flops = 4 * B * T * S * FF + 4 * B * T * S           # 2 matmuls + elementwise
    bytes_accessed = 4 * (2 * B * T * S                   # x in + out
                          + 2 * tm * S                    # folded BN scale/shift
                          + 2 * S * FF + FF + S)          # weights + biases

    out2d = pl.pallas_call(
        feature_mixing_kernel,
        out_shape=jax.ShapeDtypeStruct((B * T, S), x.dtype),
        grid_spec=pltpu.PrefetchScalarGridSpec(
            num_scalar_prefetch=0,
            grid=grid,
            in_specs=[
                pl.BlockSpec((tm, S), lambda i: (i, 0)),   # x rows
                const2d((tm, S)),                          # BN scale (resident)
                const2d((tm, S)),                          # BN shift (resident)
                const2d((S, FF)),                          # W1^T
                const2d((1, FF)),                          # b1
                const2d((FF, S)),                          # W2^T
                const2d((1, S)),                           # b2
            ],
            out_specs=pl.BlockSpec((tm, S), lambda i: (i, 0)),
        ),
        compiler_params=pltpu.CompilerParams(
            dimension_semantics=("parallel",),             # megacore-shard batch
            vmem_limit_bytes=32 * 1024 * 1024,             # safe on v5e/v6e/v7x
        ),
        cost_estimate=pl.CostEstimate(
            flops=flops, transcendentals=0, bytes_accessed=bytes_accessed),
    )(x2d, scale_t, shift_t, w1, b1_2d, w2, b2_2d)

    return out2d.reshape(B, T, S)


def feature_mixing_ref(x, bn_mean, bn_var, bn_gamma, bn_beta, w1, b1, w2, b2):
    B, T, S = x.shape
    xf = x.reshape(B, T * S)
    xn = (xf - bn_mean) / jnp.sqrt(bn_var + BN_EPS) * bn_gamma + bn_beta
    xn = xn.reshape(B, T, S)
    h = jax.nn.relu(jnp.einsum('bts,sf->btf', xn, w1) + b1)
    y = jnp.einsum('btf,fs->bts', h, w2) + b2
    return y + x


if __name__ == "__main__":
    # Small shapes consistent with the module's forward.
    B, T, S, FF = 2, 8, 4, 32          # batch, input_size, n_series, ff_dim

    key = jax.random.PRNGKey(0)
    ks = jax.random.split(key, 8)

    x = jax.random.normal(ks[0], (B, T, S), dtype=jnp.float32)

    # Deterministic synthetic parameters (shapes from __init__).
    bn_gamma = 1.0 + 0.1 * jax.random.normal(ks[1], (T * S,), dtype=jnp.float32)
    bn_beta = 0.1 * jax.random.normal(ks[2], (T * S,), dtype=jnp.float32)
    bn_mean = 0.1 * jax.random.normal(ks[3], (T * S,), dtype=jnp.float32)
    bn_var = 1.0 + 0.1 * jax.random.uniform(ks[4], (T * S,), dtype=jnp.float32)

    # nn.Linear(n_series, ff_dim): weight (FF, S); we pass W^T = (S, FF).
    w1 = (jax.random.normal(ks[5], (S, FF), dtype=jnp.float32) / jnp.sqrt(S))
    b1 = 0.1 * jax.random.normal(ks[6], (FF,), dtype=jnp.float32)
    # nn.Linear(ff_dim, n_series): weight (S, FF); we pass W^T = (FF, S).
    w2 = (jax.random.normal(ks[7], (FF, S), dtype=jnp.float32) / jnp.sqrt(FF))
    b2 = 0.05 * jnp.arange(S, dtype=jnp.float32)

    out = feature_mixing(x, bn_mean, bn_var, bn_gamma, bn_beta, w1, b1, w2, b2)
    out = jax.block_until_ready(out)

    ref = feature_mixing_ref(x, bn_mean, bn_var, bn_gamma, bn_beta, w1, b1, w2, b2)
    assert out.shape == (B, T, S)
    assert jnp.allclose(out, ref, atol=1e-5, rtol=1e-5), "mismatch vs JAX reference"

    print("KERNEL_OK")
</pallas_src>

<mosaic_0001>
module attributes {stable_mosaic.version = 11 : i64} {
  func.func @feature_mixing_kernel(%arg0: i32, %arg1: memref<8x4xf32, #tpu.memory_space<vmem>>, %arg2: memref<8x4xf32, #tpu.memory_space<vmem>>, %arg3: memref<8x4xf32, #tpu.memory_space<vmem>>, %arg4: memref<4x32xf32, #tpu.memory_space<vmem>>, %arg5: memref<1x32xf32, #tpu.memory_space<vmem>>, %arg6: memref<32x4xf32, #tpu.memory_space<vmem>>, %arg7: memref<1x4xf32, #tpu.memory_space<vmem>>, %arg8: memref<8x4xf32, #tpu.memory_space<vmem>>) attributes {dimension_semantics = [#tpu.dimension_semantics<parallel>], iteration_bounds = array<i64: 2>, scalar_prefetch = 0 : i64, scratch_operands = 0 : i64, tpu.core_type = #tpu.core_type<tc>, window_params = [{transform_indices = @transform_0, window_bounds = array<i64: 8, 4>}, {pipeline_mode = #tpu.pipeline_mode<synchronous>, transform_indices = @transform_1, window_bounds = array<i64: 8, 4>}, {pipeline_mode = #tpu.pipeline_mode<synchronous>, transform_indices = @transform_2, window_bounds = array<i64: 8, 4>}, {pipeline_mode = #tpu.pipeline_mode<synchronous>, transform_indices = @transform_3, window_bounds = array<i64: 4, 32>}, {pipeline_mode = #tpu.pipeline_mode<synchronous>, transform_indices = @transform_4, window_bounds = array<i64: 1, 32>}, {pipeline_mode = #tpu.pipeline_mode<synchronous>, transform_indices = @transform_5, window_bounds = array<i64: 32, 4>}, {pipeline_mode = #tpu.pipeline_mode<synchronous>, transform_indices = @transform_6, window_bounds = array<i64: 1, 4>}, {transform_indices = @transform_7, window_bounds = array<i64: 8, 4>}]} {
    %c0 = arith.constant 0 : index
    %c0_0 = arith.constant 0 : index
    %0 = vector.load %arg1[%c0, %c0_0] : memref<8x4xf32, #tpu.memory_space<vmem>>, vector<8x4xf32>
    %c0_1 = arith.constant 0 : index
    %c0_2 = arith.constant 0 : index
    %1 = vector.load %arg2[%c0_1, %c0_2] : memref<8x4xf32, #tpu.memory_space<vmem>>, vector<8x4xf32>
    %2 = arith.mulf %0, %1 : vector<8x4xf32>
    %c0_3 = arith.constant 0 : index
    %c0_4 = arith.constant 0 : index
    %3 = vector.load %arg3[%c0_3, %c0_4] : memref<8x4xf32, #tpu.memory_space<vmem>>, vector<8x4xf32>
    %4 = arith.addf %2, %3 : vector<8x4xf32>
    %c0_5 = arith.constant 0 : index
    %c0_6 = arith.constant 0 : index
    %5 = vector.load %arg4[%c0_5, %c0_6] : memref<4x32xf32, #tpu.memory_space<vmem>>, vector<4x32xf32>
    %cst = arith.constant dense<0.000000e+00> : vector<8x32xf32>
    %6 = tpu.matmul %4, %5, %cst {dimension_numbers = #tpu.dot_dimension_numbers<[1], [0], [0], [1], [0, 0, 1, 1], [], []>} : vector<8x4xf32>, vector<4x32xf32>, vector<8x32xf32> -> vector<8x32xf32>
    %c0_7 = arith.constant 0 : index
    %c0_8 = arith.constant 0 : index
    %7 = vector.load %arg5[%c0_7, %c0_8] : memref<1x32xf32, #tpu.memory_space<vmem>>, vector<1x32xf32>
    %8 = vector.broadcast %7 : vector<1x32xf32> to vector<8x32xf32>
    %9 = arith.addf %6, %8 : vector<8x32xf32>
    %cst_9 = arith.constant 0.000000e+00 : f32
    %10 = vector.broadcast %cst_9 : f32 to vector<8x32xf32>
    %11 = arith.maximumf %9, %10 : vector<8x32xf32>
    %c0_10 = arith.constant 0 : index
    %c0_11 = arith.constant 0 : index
    %12 = vector.load %arg6[%c0_10, %c0_11] : memref<32x4xf32, #tpu.memory_space<vmem>>, vector<32x4xf32>
    %cst_12 = arith.constant dense<0.000000e+00> : vector<8x4xf32>
    %13 = tpu.matmul %11, %12, %cst_12 {dimension_numbers = #tpu.dot_dimension_numbers<[1], [0], [0], [1], [0, 0, 1, 1], [], []>} : vector<8x32xf32>, vector<32x4xf32>, vector<8x4xf32> -> vector<8x4xf32>
    %c0_13 = arith.constant 0 : index
    %c0_14 = arith.constant 0 : index
    %14 = vector.load %arg7[%c0_13, %c0_14] : memref<1x4xf32, #tpu.memory_space<vmem>>, vector<1x4xf32>
    %15 = vector.broadcast %14 : vector<1x4xf32> to vector<8x4xf32>
    %16 = arith.addf %13, %15 : vector<8x4xf32>
    %17 = arith.addf %16, %0 : vector<8x4xf32>
    %c0_15 = arith.constant 0 : index
    %c0_16 = arith.constant 0 : index
    %18 = vector.load %arg8[%c0_15, %c0_16] : memref<8x4xf32, #tpu.memory_space<vmem>>, vector<8x4xf32>
    tpu.vector_store %arg8[%c0_15, %c0_16], %17 {strides = array<i32>} : memref<8x4xf32, #tpu.memory_space<vmem>>, vector<8x4xf32>,
    return
  }
  func.func @transform_0(%arg0: i32) -> (i32, i32) {
    %c0_i32 = arith.constant 0 : i32
    %c0_i32_0 = arith.constant 0 : i32
    return %arg0, %c0_i32 : i32, i32
  }
  func.func @transform_1(%arg0: i32) -> (i32, i32) {
    %c0_i32 = arith.constant 0 : i32
    %c0_i32_0 = arith.constant 0 : i32
    %c0_i32_1 = arith.constant 0 : i32
    return %c0_i32, %c0_i32_0 : i32, i32
  }
  func.func @transform_2(%arg0: i32) -> (i32, i32) {
    %c0_i32 = arith.constant 0 : i32
    %c0_i32_0 = arith.constant 0 : i32
    %c0_i32_1 = arith.constant 0 : i32
    return %c0_i32, %c0_i32_0 : i32, i32
  }
  func.func @transform_3(%arg0: i32) -> (i32, i32) {
    %c0_i32 = arith.constant 0 : i32
    %c0_i32_0 = arith.constant 0 : i32
    %c0_i32_1 = arith.constant 0 : i32
    return %c0_i32, %c0_i32_0 : i32, i32
  }
  func.func @transform_4(%arg0: i32) -> (i32, i32) {
    %c0_i32 = arith.constant 0 : i32
    %c0_i32_0 = arith.constant 0 : i32
    %c0_i32_1 = arith.constant 0 : i32
    return %c0_i32, %c0_i32_0 : i32, i32
  }
  func.func @transform_5(%arg0: i32) -> (i32, i32) {
    %c0_i32 = arith.constant 0 : i32
    %c0_i32_0 = arith.constant 0 : i32
    %c0_i32_1 = arith.constant 0 : i32
    return %c0_i32, %c0_i32_0 : i32, i32
  }
  func.func @transform_6(%arg0: i32) -> (i32, i32) {
    %c0_i32 = arith.constant 0 : i32
    %c0_i32_0 = arith.constant 0 : i32
    %c0_i32_1 = arith.constant 0 : i32
    return %c0_i32, %c0_i32_0 : i32, i32
  }
  func.func @transform_7(%arg0: i32) -> (i32, i32) {
    %c0_i32 = arith.constant 0 : i32
    %c0_i32_0 = arith.constant 0 : i32
    return %arg0, %c0_i32 : i32, i32
  }
}

</mosaic_0001>

<llo_original>
// kernel: tpu_custom_call.1
$region0: #{tpu_custom_call.1}
  #allocation0 [shape = 'u32[]', space=smem, size = 0x4, offset = 0x4, fixed_abs, tag = 'smem constant byte address 0x4 - core index']
  #allocation1 [shape = 'u32[144,128]{1,0:T(1,128)}', space=vmem, size = 0x12000, scoped, tag = 'internal scratch']
  %s0 = inlined_call_operand.vmem [shape: f32[16,4], index: 0, kind: input, shape index: {}]
  %s1 = inlined_call_operand.vmem [shape: f32[8,4], index: 1, kind: input, shape index: {}]
  %s2 = inlined_call_operand.vmem [shape: f32[8,4], index: 2, kind: input, shape index: {}]
  %s3 = inlined_call_operand.vmem [shape: f32[4,32], index: 3, kind: input, shape index: {}]
  %s4 = inlined_call_operand.vmem [shape: f32[1,32], index: 4, kind: input, shape index: {}]
  %s5 = inlined_call_operand.vmem [shape: f32[32,4], index: 5, kind: input, shape index: {}]
  %s6 = inlined_call_operand.vmem [shape: f32[1,4], index: 6, kind: input, shape index: {}]
  %s7 = inlined_call_operand.vmem [shape: f32[16,4], index: 7, kind: output, shape index: {}]
  %s8 = sld [smem:[#allocation0]]
  $region61: #{tpu_custom_call.1} parent=0
    _
  %s10 = ssub.s32 1, %s8
  %s11 = scalar_select 0, %s10, %s8
  loop: start=0, step=1, limit=4
  $region2: #{tpu_custom_call.1} parent=0 // loop_pre_header
    _
  $region3: #{tpu_custom_call.1} parent=0 // loop_header
    %s13 = sphi 0, %s17
    %p14 = scmp.ge.s32.totalorder %s13, 4
    %s23 = sphi 0, %s25
    %s26 = sphi 0, %s23
    %s27 = sphi 0, %s26
    %s43 = sphi 0, %s27
    %s47 = sphi 0, %s47
    %s49 = sphi 0, %s47
    %s50 = sphi 0, %s49
    %s64 = sphi 0, %s50
    %s68 = sphi 0, %s68
    %s70 = sphi 0, %s68
    %s71 = sphi 0, %s70
    %s85 = sphi 0, %s71
    %s89 = sphi 0, %s89
    %s91 = sphi 0, %s89
    %s92 = sphi 0, %s91
    %s106 = sphi 0, %s92
    %s110 = sphi 0, %s110
    %s112 = sphi 0, %s110
    %s113 = sphi 0, %s112
    %s127 = sphi 0, %s113
    %s131 = sphi 0, %s131
    %s133 = sphi 0, %s131
    %s134 = sphi 0, %s133
    %s148 = sphi 0, %s134
    %s152 = sphi 0, %s152
    %s154 = sphi 0, %s152
    %s155 = sphi 0, %s154
    %s169 = sphi 0, %s155
    %s175 = sphi 0, %s177
    %s178 = sphi 0, %s175
    %s179 = sphi 0, %s178
    %s195 = sphi 0, %s179
  $region4: #{tpu_custom_call.1} parent=0 // loop_header_branch
    %16 = sbr.rel (%p14) target = $region8
  $region5: #{tpu_custom_call.1} parent=0 // loop_body
    %s18 = ssub.s32 %s13, 1
    %s19 = ssub.s32 %s13, 2
    %s20 = sadd.s32 %s13, 1
    %s21 = ssub.s32 %s13, %s20
    %p22 = scmp.eq.s32.totalorder %s21, 0
    %s24 = sadd.s32 %s23, 1
    %s25 = scalar_select %p22, %s23, %s24
    %p28 = pneg %p22
    %p29 = scmp.eq.s32.totalorder %s13, 1
    %p30 = por %p28, %p29
    %p31 = scmp.ne.s32.totalorder %s23, %s26
    %p32 = scmp.eq.s32.totalorder %s13, 0
    %p33 = por %p31, %p32
    %p34 = scmp.ne.s32.totalorder %s23, %s26
    %p35 = scmp.eq.s32.totalorder %s18, 1
    %p36 = por %p34, %p35
    %p37 = scmp.ne.s32.totalorder %s26, %s27
    %p38 = scmp.eq.s32.totalorder %s18, 0
    %p39 = por %p37, %p38
    %p40 = scmp.ne.s32.totalorder %s26, %s27
    %p41 = scmp.eq.s32.totalorder %s19, 1
    %p42 = por %p40, %p41
    %p44 = scmp.ne.s32.totalorder %s27, %s43
    %p45 = scmp.eq.s32.totalorder %s19, 0
    %p46 = por %p44, %p45
    %s48 = sadd.s32 %s47, 1
    %p51 = scmp.eq.s32.totalorder %s13, 1
    %p52 = scmp.ne.s32.totalorder %s47, %s49
    %p53 = scmp.eq.s32.totalorder %s13, 0
    %p54 = por %p52, %p53
    %p55 = scmp.ne.s32.totalorder %s47, %s49
    %p56 = scmp.eq.s32.totalorder %s18, 1
    %p57 = por %p55, %p56
    %p58 = scmp.ne.s32.totalorder %s49, %s50
    %p59 = scmp.eq.s32.totalorder %s18, 0
    %p60 = por %p58, %p59
    %p61 = scmp.ne.s32.totalorder %s49, %s50
    %p62 = scmp.eq.s32.totalorder %s19, 1
    %p63 = por %p61, %p62
    %p65 = scmp.ne.s32.totalorder %s50, %s64
    %p66 = scmp.eq.s32.totalorder %s19, 0
    %p67 = por %p65, %p66
    %s69 = sadd.s32 %s68, 1
    %p72 = scmp.eq.s32.totalorder %s13, 1
    %p73 = scmp.ne.s32.totalorder %s68, %s70
    %p74 = scmp.eq.s32.totalorder %s13, 0
    %p75 = por %p73, %p74
    %p76 = scmp.ne.s32.totalorder %s68, %s70
    %p77 = scmp.eq.s32.totalorder %s18, 1
    %p78 = por %p76, %p77
    %p79 = scmp.ne.s32.totalorder %s70, %s71
    %p80 = scmp.eq.s32.totalorder %s18, 0
    %p81 = por %p79, %p80
    %p82 = scmp.ne.s32.totalorder %s70, %s71
    %p83 = scmp.eq.s32.totalorder %s19, 1
    %p84 = por %p82, %p83
    %p86 = scmp.ne.s32.totalorder %s71, %s85
    %p87 = scmp.eq.s32.totalorder %s19, 0
    %p88 = por %p86, %p87
    %s90 = sadd.s32 %s89, 1
    %p93 = scmp.eq.s32.totalorder %s13, 1
    %p94 = scmp.ne.s32.totalorder %s89, %s91
    %p95 = scmp.eq.s32.totalorder %s13, 0
    %p96 = por %p94, %p95
    %p97 = scmp.ne.s32.totalorder %s89, %s91
    %p98 = scmp.eq.s32.totalorder %s18, 1
    %p99 = por %p97, %p98
    %p100 = scmp.ne.s32.totalorder %s91, %s92
    %p101 = scmp.eq.s32.totalorder %s18, 0
    %p102 = por %p100, %p101
    %p103 = scmp.ne.s32.totalorder %s91, %s92
    %p104 = scmp.eq.s32.totalorder %s19, 1
    %p105 = por %p103, %p104
    %p107 = scmp.ne.s32.totalorder %s92, %s106
    %p108 = scmp.eq.s32.totalorder %s19, 0
    %p109 = por %p107, %p108
    %s111 = sadd.s32 %s110, 1
    %p114 = scmp.eq.s32.totalorder %s13, 1
    %p115 = scmp.ne.s32.totalorder %s110, %s112
    %p116 = scmp.eq.s32.totalorder %s13, 0
    %p117 = por %p115, %p116
    %p118 = scmp.ne.s32.totalorder %s110, %s112
    %p119 = scmp.eq.s32.totalorder %s18, 1
    %p120 = por %p118, %p119
    %p121 = scmp.ne.s32.totalorder %s112, %s113
    %p122 = scmp.eq.s32.totalorder %s18, 0
    %p123 = por %p121, %p122
    %p124 = scmp.ne.s32.totalorder %s112, %s113
    %p125 = scmp.eq.s32.totalorder %s19, 1
    %p126 = por %p124, %p125
    %p128 = scmp.ne.s32.totalorder %s113, %s127
    %p129 = scmp.eq.s32.totalorder %s19, 0
    %p130 = por %p128, %p129
    %s132 = sadd.s32 %s131, 1
    %p135 = scmp.eq.s32.totalorder %s13, 1
    %p136 = scmp.ne.s32.totalorder %s131, %s133
    %p137 = scmp.eq.s32.totalorder %s13, 0
    %p138 = por %p136, %p137
    %p139 = scmp.ne.s32.totalorder %s131, %s133
    %p140 = scmp.eq.s32.totalorder %s18, 1
    %p141 = por %p139, %p140
    %p142 = scmp.ne.s32.totalorder %s133, %s134
    %p143 = scmp.eq.s32.totalorder %s18, 0
    %p144 = por %p142, %p143
    %p145 = scmp.ne.s32.totalorder %s133, %s134
    %p146 = scmp.eq.s32.totalorder %s19, 1
    %p147 = por %p145, %p146
    %p149 = scmp.ne.s32.totalorder %s134, %s148
    %p150 = scmp.eq.s32.totalorder %s19, 0
    %p151 = por %p149, %p150
    %s153 = sadd.s32 %s152, 1
    %p156 = scmp.eq.s32.totalorder %s13, 1
    %p157 = scmp.ne.s32.totalorder %s152, %s154
    %p158 = scmp.eq.s32.totalorder %s13, 0
    %p159 = por %p157, %p158
    %p160 = scmp.ne.s32.totalorder %s152, %s154
    %p161 = scmp.eq.s32.totalorder %s18, 1
    %p162 = por %p160, %p161
    %p163 = scmp.ne.s32.totalorder %s154, %s155
    %p164 = scmp.eq.s32.totalorder %s18, 0
    %p165 = por %p163, %p164
    %p166 = scmp.ne.s32.totalorder %s154, %s155
    %p167 = scmp.eq.s32.totalorder %s19, 1
    %p168 = por %p166, %p167
    %p170 = scmp.ne.s32.totalorder %s155, %s169
    %p171 = scmp.eq.s32.totalorder %s19, 0
    %p172 = por %p170, %p171
    %s173 = ssub.s32 %s13, %s20
    %p174 = scmp.eq.s32.totalorder %s173, 0
    %s176 = sadd.s32 %s175, 1
    %s177 = scalar_select %p174, %s175, %s176
    %p180 = pneg %p174
    %p181 = scmp.eq.s32.totalorder %s13, 1
    %p182 = por %p180, %p181
    %p183 = scmp.ne.s32.totalorder %s175, %s178
    %p184 = scmp.eq.s32.totalorder %s13, 0
    %p185 = por %p183, %p184
    %p186 = scmp.ne.s32.totalorder %s175, %s178
    %p187 = scmp.eq.s32.totalorder %s18, 1
    %p188 = por %p186, %p187
    %p189 = scmp.ne.s32.totalorder %s178, %s179
    %p190 = scmp.eq.s32.totalorder %s18, 0
    %p191 = por %p189, %p190
    %p192 = scmp.ne.s32.totalorder %s178, %s179
    %p193 = scmp.eq.s32.totalorder %s19, 1
    %p194 = por %p192, %p193
    %p196 = scmp.ne.s32.totalorder %s179, %s195
    %p197 = scmp.eq.s32.totalorder %s19, 0
    %p198 = por %p196, %p197
    %p199 = scmp.le.s32.totalorder 1, %s13
    %p200 = scmp.lt.s32.totalorder %s13, 3
    %p201 = pnand %p199, %p200
    %p202 = pneg %p201
    // Predicated region
    $region9: #{tpu_custom_call.1} parent=5 // pred_check
      _
    $region10: #{tpu_custom_call.1} parent=5 // pred_check_branch
      %204 = sbr.rel (%p201) target = $region12
    $region11: #{tpu_custom_call.1} parent=5 // pred_region
      %s205 = ssub.s32 %s13, 1
      // Predicated region
      $region13: #{tpu_custom_call.1} parent=11 // pred_check
        %p206 = pneg %p60
      $region14: #{tpu_custom_call.1} parent=11 // pred_check_branch
        %208 = sbr.rel (%p206) target = $region16
      $region15: #{tpu_custom_call.1} parent=11 // pred_region
        _
      $region16: #{tpu_custom_call.1} parent=11 // pred_fallthru
        _
      // Predicated region
      $region17: #{tpu_custom_call.1} parent=11 // pred_check
        %p209 = pneg %p81
      $region18: #{tpu_custom_call.1} parent=11 // pred_check_branch
        %211 = sbr.rel (%p209) target = $region20
      $region19: #{tpu_custom_call.1} parent=11 // pred_region
        _
      $region20: #{tpu_custom_call.1} parent=11 // pred_fallthru
        _
      // Predicated region
      $region21: #{tpu_custom_call.1} parent=11 // pred_check
        %p212 = pneg %p102
      $region22: #{tpu_custom_call.1} parent=11 // pred_check_branch
        %214 = sbr.rel (%p212) target = $region24
      $region23: #{tpu_custom_call.1} parent=11 // pred_region
        _
      $region24: #{tpu_custom_call.1} parent=11 // pred_fallthru
        _
      // Predicated region
      $region25: #{tpu_custom_call.1} parent=11 // pred_check
        %p215 = pneg %p123
      $region26: #{tpu_custom_call.1} parent=11 // pred_check_branch
        %217 = sbr.rel (%p215) target = $region28
      $region27: #{tpu_custom_call.1} parent=11 // pred_region
        _
      $region28: #{tpu_custom_call.1} parent=11 // pred_fallthru
        _
      // Predicated region
      $region29: #{tpu_custom_call.1} parent=11 // pred_check
        %p218 = pneg %p144
      $region30: #{tpu_custom_call.1} parent=11 // pred_check_branch
        %220 = sbr.rel (%p218) target = $region32
      $region31: #{tpu_custom_call.1} parent=11 // pred_region
        _
      $region32: #{tpu_custom_call.1} parent=11 // pred_fallthru
        _
      // Predicated region
      $region33: #{tpu_custom_call.1} parent=11 // pred_check
        %p221 = pneg %p165
      $region34: #{tpu_custom_call.1} parent=11 // pred_check_branch
        %223 = sbr.rel (%p221) target = $region36
      $region35: #{tpu_custom_call.1} parent=11 // pred_region
        _
      $region36: #{tpu_custom_call.1} parent=11 // pred_fallthru
        _
    $region12: #{tpu_custom_call.1} parent=5 // pred_fallthru
      _
    %p224 = scmp.lt.s32.totalorder %s13, 2
    // Predicated region
    $region37: #{tpu_custom_call.1} parent=5 // pred_check
      %p225 = pneg %p224
    $region38: #{tpu_custom_call.1} parent=5 // pred_check_branch
      %227 = sbr.rel (%p225) target = $region40
    $region39: #{tpu_custom_call.1} parent=5 // pred_region
      // Predicated region
      $region41: #{tpu_custom_call.1} parent=39 // pred_check
        %p228 = pneg %p33
      $region42: #{tpu_custom_call.1} parent=39 // pred_check_branch
        %230 = sbr.rel (%p228) target = $region44
      $region43: #{tpu_custom_call.1} parent=39 // pred_region
        %p231 = scmp.lt.s32.totalorder %s13, 1
        %s232 = scalar_select %p231, %s13, 1
        %s233 = smul.addr %s232, 8
        %s234 = scalar_lea.vmem %s0, %s233
      $region44: #{tpu_custom_call.1} parent=39 // pred_fallthru
        _
    $region40: #{tpu_custom_call.1} parent=5 // pred_fallthru
      _
    %p235 = scmp.le.s32.totalorder 1, %s13
    %p236 = scmp.lt.s32.totalorder %s13, 3
    %p237 = pnand %p235, %p236
    %p238 = pneg %p237
    // Predicated region
    $region45: #{tpu_custom_call.1} parent=5 // pred_check
      _
    $region46: #{tpu_custom_call.1} parent=5 // pred_check_branch
      %240 = sbr.rel (%p237) target = $region48
    $region47: #{tpu_custom_call.1} parent=5 // pred_region
      %s241 = ssub.s32 %s13, 1
      %p242 = scmp.lt.s32.totalorder %s18, 1
      %s243 = scalar_select %p242, %s18, 1
      %s244 = smul.addr %s243, 8
      %s245 = scalar_lea.vmem %s0, %s244
      %p246 = pneg %p39
      %p247 = pneg %p36
      %p248 = pneg %p60
      %p249 = pneg %p57
      %p250 = pneg %p81
      %p251 = pneg %p78
      %p252 = pneg %p102
      %p253 = pneg %p99
      %p254 = pneg %p123
      %p255 = pneg %p120
      %p256 = pneg %p144
      %p257 = pneg %p141
      %p258 = pneg %p165
      %p259 = pneg %p162
      %p260 = pneg %p191
      %p261 = pneg %p188
      %p262 = scmp.lt.s32.totalorder %s18, 1
      %s263 = scalar_select %p262, %s18, 1
      %s264 = smul.addr %s263, 8
      %s265 = scalar_lea.vmem %s7, %s264
      %p266 = scmp.lt.s32.totalorder %s18, 1
      %s267 = scalar_select %p266, %s18, 1
      %s268 = smul.addr %s267, 8
      %s269 = scalar_lea.vmem %s0, %s268
      %p270 = scmp.lt.s32.totalorder %s18, 1
      %s271 = scalar_select %p270, %s18, 1
      %s272 = smul.addr %s271, 8
      %s273 = scalar_lea.vmem %s7, %s272
      %v274 = vld [vmem:[%s269] sm:$0xff]
      %v275 = vld [vmem:[%s1] sm:$0xff]
      %v276 = vmul.f32 %v274, %v275
      %v277 = vld [vmem:[%s2] sm:$0xff]
      %v278 = vadd.f32 %v276, %v277
      %v279 = vld [vmem:[%s3] sm:$0xf]
      %v280 = vld [vmem:[%s4] sm:$0x1]
      %v282 = vlaneseq
      %v283 = vshrl.u32 %v282, 7
      %v284 = vsub.s32 0, %v283
      %v285 = vrot.slane %v280, %v284
      %vm287 = vcmask 31744
      %v289 = vsel %vm287, %v278, 0
      %vm291 = vcmask 1043456
      %v293 = vsel %vm291, %v279, 0
      %295 = vmatprep.subr.mxu0 0.0
      %296 = vmatpush1.msra.mxu0 %v293
      %297 = vmatprep.subr.mxu0 0.0
      %298 = vmatpush1.msra.mxu0 0.0
      %299 = vmatprep.subr.mxu0 0.0
      %300 = vmatpush1.msra.mxu0 0.0
      %301 = vmatprep.subr.mxu0 0.0
      %302 = vmatpush1.msra.mxu0 0.0
      %303 = vmatprep.subr.mxu0 0.0
      %304 = vmatpush1.msra.mxu0 0.0
      %305 = vmatprep.subr.mxu0 0.0
      %306 = vmatpush1.msra.mxu0 0.0
      %307 = vmatprep.subr.mxu0 0.0
      %308 = vmatpush1.msra.mxu0 0.0
      %309 = vmatprep.subr.mxu0 0.0
      %310 = vmatpush1.msra.mxu0 0.0
      %311 = vmatprep.subr.mxu0 0.0
      %312 = vmatpush1.msra.mxu0 0.0
      %313 = vmatprep.subr.mxu0 0.0
      %314 = vmatpush1.msra.mxu0 0.0
      %315 = vmatprep.subr.mxu0 0.0
      %316 = vmatpush1.msra.mxu0 0.0
      %317 = vmatprep.subr.mxu0 0.0
      %318 = vmatpush1.msra.mxu0 0.0
      %319 = vmatprep.subr.mxu0 0.0
      %320 = vmatpush1.msra.mxu0 0.0
      %321 = vmatprep.subr.mxu0 0.0
      %322 = vmatpush1.msra.mxu0 0.0
      %323 = vmatprep.subr.mxu0 0.0
      %324 = vmatpush1.msra.mxu0 0.0
      %325 = vmatprep.subr.mxu0 0.0
      %326 = vmatpush1.msra.mxu0 0.0
      %327 = vmatprep.subr.mxu0 0.0
      %328 = vmatpush1.msra.mxu0 0.0
      %329 = vmatprep.subr.mxu0 0.0
      %330 = vmatpush1.msra.mxu0 0.0
      %331 = vmatprep.subr.mxu0 0.0
      %332 = vmatpush1.msra.mxu0 0.0
      %333 = vmatprep.subr.mxu0 0.0
      %334 = vmatpush1.msra.mxu0 0.0
      %335 = vmatprep.subr.mxu0 0.0
      %336 = vmatpush1.msra.mxu0 0.0
      %337 = vmatprep.subr.mxu0 0.0
      %338 = vmatpush1.msra.mxu0 0.0
      %339 = vmatprep.subr.mxu0 0.0
      %340 = vmatpush1.msra.mxu0 0.0
      %341 = vmatprep.subr.mxu0 0.0
      %342 = vmatpush1.msra.mxu0 0.0
      %343 = vmatprep.subr.mxu0 0.0
      %344 = vmatpush1.msra.mxu0 0.0
      %345 = vmatprep.subr.mxu0 0.0
      %346 = vmatpush1.msra.mxu0 0.0
      %347 = vmatprep.subr.mxu0 0.0
      %348 = vmatpush1.msra.mxu0 0.0
      %349 = vmatprep.subr.mxu0 0.0
      %350 = vmatpush1.msra.mxu0 0.0
      %351 = vmatprep.subr.mxu0 0.0
      %352 = vmatpush1.msra.mxu0 0.0
      %353 = vmatprep.subr.mxu0 0.0
      %354 = vmatpush1.msra.mxu0 0.0
      %355 = vmatprep.subr.mxu0 0.0
      %356 = vmatpush1.msra.mxu0 0.0
      %357 = vmatprep.subr.mxu0 0.0
      %358 = vmatpush1.msra.mxu0 0.0
      %359 = vmatprep.mubr.f32.mxu0 0.0
      %360 = vmatmul.mubr.f32.gmra.mrb[0].mxu0 %v289
      %v361 = vpop.f32.mrb[0].mxu0
      %v362 = vadd.f32 %v285, %v361
      %v363 = vpop.f32.mrb[0].mxu0
      %364 = vdwg.mxu0
      %v365 = vmax.f32 %v362, 0.0
      %v366 = vld [vmem:[%s5] sm:$0xff]
      %v367 = vld [vmem:[%s5 + $0x8] sm:$0xff]
      %v368 = vld [vmem:[%s5 + $0x10] sm:$0xff]
      %v369 = vld [vmem:[%s5 + $0x18] sm:$0xff]
      %v370 = vld [vmem:[%s6] sm:$0x1]
      %v372 = vlaneseq
      %v373 = vshrl.u32 %v372, 7
      %v374 = vsub.s32 0, %v373
      %v375 = vrot.slane %v370, %v374
      %vm377 = vcmask 261120
      %v379 = vsel %vm377, %v365, 0
      %381 = vmatprep.subr.mxu0 0.0
      %382 = vmatpush1.msra.mxu0 %v366
      %383 = vmatprep.subr.mxu0 0.0
      %384 = vmatpush1.msra.mxu0 %v367
      %385 = vmatprep.subr.mxu0 0.0
      %386 = vmatpush1.msra.mxu0 %v368
      %387 = vmatprep.subr.mxu0 0.0
      %388 = vmatpush1.msra.mxu0 %v369
      %389 = vmatprep.subr.mxu0 0.0
      %390 = vmatpush1.msra.mxu0 0.0
      %391 = vmatprep.subr.mxu0 0.0
      %392 = vmatpush1.msra.mxu0 0.0
      %393 = vmatprep.subr.mxu0 0.0
      %394 = vmatpush1.msra.mxu0 0.0
      %395 = vmatprep.subr.mxu0 0.0
      %396 = vmatpush1.msra.mxu0 0.0
      %397 = vmatprep.subr.mxu0 0.0
      %398 = vmatpush1.msra.mxu0 0.0
      %399 = vmatprep.subr.mxu0 0.0
      %400 = vmatpush1.msra.mxu0 0.0
      %401 = vmatprep.subr.mxu0 0.0
      %402 = vmatpush1.msra.mxu0 0.0
      %403 = vmatprep.subr.mxu0 0.0
      %404 = vmatpush1.msra.mxu0 0.0
      %405 = vmatprep.subr.mxu0 0.0
      %406 = vmatpush1.msra.mxu0 0.0
      %407 = vmatprep.subr.mxu0 0.0
      %408 = vmatpush1.msra.mxu0 0.0
      %409 = vmatprep.subr.mxu0 0.0
      %410 = vmatpush1.msra.mxu0 0.0
      %411 = vmatprep.subr.mxu0 0.0
      %412 = vmatpush1.msra.mxu0 0.0
      %413 = vmatprep.subr.mxu0 0.0
      %414 = vmatpush1.msra.mxu0 0.0
      %415 = vmatprep.subr.mxu0 0.0
      %416 = vmatpush1.msra.mxu0 0.0
      %417 = vmatprep.subr.mxu0 0.0
      %418 = vmatpush1.msra.mxu0 0.0
      %419 = vmatprep.subr.mxu0 0.0
      %420 = vmatpush1.msra.mxu0 0.0
      %421 = vmatprep.subr.mxu0 0.0
      %422 = vmatpush1.msra.mxu0 0.0
      %423 = vmatprep.subr.mxu0 0.0
      %424 = vmatpush1.msra.mxu0 0.0
      %425 = vmatprep.subr.mxu0 0.0
      %426 = vmatpush1.msra.mxu0 0.0
      %427 = vmatprep.subr.mxu0 0.0
      %428 = vmatpush1.msra.mxu0 0.0
      %429 = vmatprep.subr.mxu0 0.0
      %430 = vmatpush1.msra.mxu0 0.0
      %431 = vmatprep.subr.mxu0 0.0
      %432 = vmatpush1.msra.mxu0 0.0
      %433 = vmatprep.subr.mxu0 0.0
      %434 = vmatpush1.msra.mxu0 0.0
      %435 = vmatprep.subr.mxu0 0.0
      %436 = vmatpush1.msra.mxu0 0.0
      %437 = vmatprep.subr.mxu0 0.0
      %438 = vmatpush1.msra.mxu0 0.0
      %439 = vmatprep.subr.mxu0 0.0
      %440 = vmatpush1.msra.mxu0 0.0
      %441 = vmatprep.subr.mxu0 0.0
      %442 = vmatpush1.msra.mxu0 0.0
      %443 = vmatprep.subr.mxu0 0.0
      %444 = vmatpush1.msra.mxu0 0.0
      %445 = vmatprep.mubr.f32.mxu0 0.0
      %446 = vmatmul.mubr.f32.gmra.mrb[0].mxu0 %v379
      %v447 = vpop.f32.mrb[0].mxu0
      %v448 = vadd.f32 %v375, %v447
      %v449 = vpop.f32.mrb[0].mxu0
      %450 = vdwg.mxu0
      %v451 = vadd.f32 %v448, %v274
      %452 = vst.msk [vmem:[%s273] sm:$0xff] %vm287, %v451
      %p453 = scmp.lt.s32.totalorder %s18, 1
      %s454 = scalar_select %p453, %s18, 1
      %s455 = smul.addr %s454, 8
      %s456 = scalar_lea.vmem %s7, %s455
      // Predicated region
      $region49: #{tpu_custom_call.1} parent=47 // pred_check
        %p457 = pneg %p188
      $region50: #{tpu_custom_call.1} parent=47 // pred_check_branch
        %459 = sbr.rel (%p457) target = $region52
      $region51: #{tpu_custom_call.1} parent=47 // pred_region
        _
      $region52: #{tpu_custom_call.1} parent=47 // pred_fallthru
        _
    $region48: #{tpu_custom_call.1} parent=5 // pred_fallthru
      _
    %p460 = scmp.le.s32.totalorder 2, %s13
    // Predicated region
    $region53: #{tpu_custom_call.1} parent=5 // pred_check
      %p461 = pneg %p460
    $region54: #{tpu_custom_call.1} parent=5 // pred_check_branch
      %463 = sbr.rel (%p461) target = $region56
    $region55: #{tpu_custom_call.1} parent=5 // pred_region
      %s464 = ssub.s32 %s13, 2
      // Predicated region
      $region57: #{tpu_custom_call.1} parent=55 // pred_check
        %p465 = pneg %p194
      $region58: #{tpu_custom_call.1} parent=55 // pred_check_branch
        %467 = sbr.rel (%p465) target = $region60
      $region59: #{tpu_custom_call.1} parent=55 // pred_region
        %p468 = scmp.lt.s32.totalorder %s19, 1
        %s469 = scalar_select %p468, %s19, 1
        %s470 = smul.addr %s469, 8
        %s471 = scalar_lea.vmem %s7, %s470
      $region60: #{tpu_custom_call.1} parent=55 // pred_fallthru
        _
    $region56: #{tpu_custom_call.1} parent=5 // pred_fallthru
      _
  $region6: #{tpu_custom_call.1} parent=0 // loop_footer
    %s17 = sadd.s32 1, %s13
  $region7: #{tpu_custom_call.1} parent=0 // loop_footer_branch
    %12 = sbr.rel target = $region3
  $region8: #{tpu_custom_call.1} parent=0 // loop_exit
    _

</llo_original>
